<compile_context>
chip_gen: v5e
topology: v5e:2x2
jax: 0.10.0
libtpu: 0.0.40
codegen_flags: <defaults>
</compile_context>

<pallas_src>
import math

import jax
import jax.numpy as jnp
from jax.experimental import pallas as pl
from jax.experimental.pallas import tpu as pltpu

N = 5
IN_FEATURES = N * N            # 25
K_IN_PAD = 32                  # features padded 25 -> 32 only (tiny HBM stream)
MLP_1_HIDDEN_SIZE = 128
MLP_2_HIDDEN_SIZE = 128
ACTION_SPACE = 44
OUT_PAD = 128                  # padded output dim (lane-dense, unmasked stores)
ROW_ALIGN = 32                 # batch-tile row alignment (int8 sublane packing; >= 8)
MAX_BLOCK_M = 2048             # keeps the all-f32 path well inside v5e's 16 MiB scoped VMEM


def _round_up(x, m):
    return (x + m - 1) // m * m


def dqn_kernel(x_ref, w1_ref, b1_ref, w2_ref, b2_ref, w3_ref, b3_ref, o_ref):
    # x_ref : (TM, K_IN_PAD) boards (int8 or f32, zero-padded past 25 features)
    # wK_ref: (in_pad, out_pad) weights (f32 or bf16); bK_ref: (1, out_pad) f32
    # o_ref : (TM, OUT_PAD) f32 or bf16
    w1 = w1_ref[...]
    w2 = w2_ref[...]
    w3 = w3_ref[...]
    dt = w1.dtype  # MXU input dtype (f32 or bf16)

    # flatten + float cast from the PyTorch forward happens here, as a single
    # direct cast to the compute dtype (board values {-1,0,1} are exact).
    x = x_ref[...].astype(dt)

    h1 = jnp.dot(x, w1, preferred_element_type=jnp.float32) + b1_ref[...]
    h1 = jnp.maximum(h1, 0.0)                                # ReLU in f32
    h2 = jnp.dot(h1.astype(dt), w2, preferred_element_type=jnp.float32) + b2_ref[...]
    h2 = jnp.maximum(h2, 0.0)
    o_ref[...] = (jnp.dot(h2.astype(dt), w3, preferred_element_type=jnp.float32)
                  + b3_ref[...]).astype(o_ref.dtype)


def dqn_forward_batched(boards, params, *, block_m=1024, out_dtype=jnp.float32):
    """boards: (B, N, N) or (B, N*N), int dtype (cells in {-1,0,1}) or float.

    Returns (B, ACTION_SPACE) Q-values in `out_dtype`.

    block_m:   batch tile height; rounded to a multiple of 32 and capped at
               2048. 1024-2048 amortizes the ~0.35 us/step grid overhead.
    out_dtype: jnp.float32 (exact) or jnp.bfloat16 (halves output writeback).
    """
    w1, b1, w2, b2, w3, b3 = params
    B = boards.shape[0]
    x = boards.reshape(B, IN_FEATURES)
    if jnp.issubdtype(x.dtype, jnp.integer) or x.dtype == jnp.bool_:
        # Quixo cells are {-1,0,1}: int8 is exact and 4x less input HBM traffic.
        x = x.astype(jnp.int8)
    else:
        x = x.astype(jnp.float32)   # PyTorch semantics: x.float()

    # Batch tile: multiple of 32 rows; aim for >= 2 tiles when the batch is big
    # enough so both v7x TensorCores get work; cap at block_m to bound VMEM.
    block_m = min(MAX_BLOCK_M, max(ROW_ALIGN, _round_up(block_m, ROW_ALIGN)))
    b_min = _round_up(B, ROW_ALIGN)
    tm = min(block_m, max(ROW_ALIGN, _round_up(pl.cdiv(b_min, 2), ROW_ALIGN)))
    b_pad = _round_up(B, tm)
    n_tiles = b_pad // tm

    # NOTE: this pad materializes a copy of the activation stream in HBM
    # (pallas inputs do not fuse with the pad), but it is only 32 B/row in
    # int8 — vs 512 B/row for the previous 25->128 f32 pad.
    x = jnp.pad(x, ((0, b_pad - B), (0, K_IN_PAD - IN_FEATURES)))

    out = pl.pallas_call(
        dqn_kernel,
        out_shape=jax.ShapeDtypeStruct((b_pad, OUT_PAD), out_dtype),
        grid_spec=pltpu.PrefetchScalarGridSpec(
            num_scalar_prefetch=0,
            grid=(n_tiles,),
            in_specs=[
                # activations: one (tm, 32) tile per grid step
                pl.BlockSpec((tm, K_IN_PAD), lambda i: (i, 0)),
                # weights/biases: constant index_map -> stay VMEM-resident
                pl.BlockSpec((K_IN_PAD, MLP_1_HIDDEN_SIZE), lambda i: (0, 0)),
                pl.BlockSpec((1, MLP_1_HIDDEN_SIZE), lambda i: (0, 0)),
                pl.BlockSpec((MLP_1_HIDDEN_SIZE, MLP_2_HIDDEN_SIZE), lambda i: (0, 0)),
                pl.BlockSpec((1, MLP_2_HIDDEN_SIZE), lambda i: (0, 0)),
                pl.BlockSpec((MLP_2_HIDDEN_SIZE, OUT_PAD), lambda i: (0, 0)),
                pl.BlockSpec((1, OUT_PAD), lambda i: (0, 0)),
            ],
            out_specs=pl.BlockSpec((tm, OUT_PAD), lambda i: (i, 0)),
        ),
        compiler_params=pltpu.CompilerParams(
            # Batch tiles are independent -> megacore / 2-TC (v7x) split.
            dimension_semantics=("parallel",),
        ),
    )(x, w1, b1, w2, b2, w3, b3)

    return out[:B, :ACTION_SPACE]


def dqn_forward(board, params):
    """Single board (N, N) -> (ACTION_SPACE,) f32, matching the PyTorch forward.

    At B=1 a pallas_call is pure launch + ~150 KB weight-DMA overhead, so this
    path is plain XLA. Batch boards and use dqn_forward_batched for throughput.
    """
    w1, b1, w2, b2, w3, b3 = params
    x = board.reshape(IN_FEATURES).astype(jnp.float32)
    h1 = jnp.maximum(x @ w1[:IN_FEATURES].astype(jnp.float32) + b1[0], 0.0)
    h2 = jnp.maximum(h1 @ w2.astype(jnp.float32) + b2[0], 0.0)
    return (h2 @ w3.astype(jnp.float32) + b3[0])[:ACTION_SPACE]


def init_params(key, dtype=jnp.float32):
    """torch.nn.Linear-style U(-1/sqrt(fan_in), ...) init, padded to kernel tiles.

    Weights are (in_pad, out_pad) (transposed vs. PyTorch); padded rows of w1
    and padded cols of w3/b3 are exactly zero so padding is a numerical no-op.
    """
    def linear(key, fan_in, fan_out, in_pad, out_pad):
        kw, kb = jax.random.split(key)
        bound = 1.0 / math.sqrt(fan_in)
        w = jax.random.uniform(kw, (fan_in, fan_out), jnp.float32, -bound, bound)
        b = jax.random.uniform(kb, (1, fan_out), jnp.float32, -bound, bound)
        w = jnp.pad(w, ((0, in_pad - fan_in), (0, out_pad - fan_out)))
        b = jnp.pad(b, ((0, 0), (0, out_pad - fan_out)))
        return w.astype(dtype), b  # biases stay f32

    k1, k2, k3 = jax.random.split(key, 3)
    w1, b1 = linear(k1, IN_FEATURES, MLP_1_HIDDEN_SIZE, K_IN_PAD, MLP_1_HIDDEN_SIZE)
    w2, b2 = linear(k2, MLP_1_HIDDEN_SIZE, MLP_2_HIDDEN_SIZE,
                    MLP_1_HIDDEN_SIZE, MLP_2_HIDDEN_SIZE)
    w3, b3 = linear(k3, MLP_2_HIDDEN_SIZE, ACTION_SPACE, MLP_2_HIDDEN_SIZE, OUT_PAD)
    return (w1, b1, w2, b2, w3, b3)


def cast_params_for_mxu(params, dtype=jnp.bfloat16):
    """bf16 weights for v6e/v7x throughput (biases / accumulation stay f32)."""
    w1, b1, w2, b2, w3, b3 = params
    return (w1.astype(dtype), b1, w2.astype(dtype), b2, w3.astype(dtype), b3)


def reference_forward(boards, params):
    """Pure-JAX reference on the un-padded math (uses the weights as f32)."""
    w1, b1, w2, b2, w3, b3 = params
    x = boards.reshape(boards.shape[0], IN_FEATURES).astype(jnp.float32)
    h1 = jnp.maximum(x @ w1[:IN_FEATURES].astype(jnp.float32) + b1[0], 0.0)
    h2 = jnp.maximum(h1 @ w2.astype(jnp.float32) + b2[0], 0.0)
    out = h2 @ w3.astype(jnp.float32) + b3[0]
    return out[:, :ACTION_SPACE]


if __name__ == "__main__":
    key = jax.random.PRNGKey(0)
    kp, kb = jax.random.split(key)
    params = init_params(kp)  # f32, padded

    # Small batch of Quixo boards: 5x5 cells with values in {-1, 0, 1}
    B = 8
    boards = jax.random.randint(kb, (B, N, N), -1, 2, dtype=jnp.int32)

    # Batched f32 path (single tile)
    out = jax.block_until_ready(dqn_forward_batched(boards, params))
    ref = jax.block_until_ready(reference_forward(boards, params))
    assert out.shape == (B, ACTION_SPACE)
    assert jnp.allclose(out, ref, atol=1e-4, rtol=1e-4)

    # Multi-tile path (n_tiles >= 2 -> both v7x TensorCores get work)
    B2 = 64
    boards2 = jax.random.randint(jax.random.PRNGKey(1), (B2, N, N), -1, 2,
                                 dtype=jnp.int32)
    out2 = jax.block_until_ready(dqn_forward_batched(boards2, params))
    ref2 = reference_forward(boards2, params)
    assert out2.shape == (B2, ACTION_SPACE)
    assert jnp.allclose(out2, ref2, atol=1e-4, rtol=1e-4)

    # Single-board path (plain XLA; matches the PyTorch forward signature)
    single = jax.block_until_ready(dqn_forward(boards[0], params))
    assert single.shape == (ACTION_SPACE,)
    assert jnp.allclose(single, ref[0], atol=1e-4, rtol=1e-4)

    # bf16 weights + bf16 output (v6e/v7x throughput mode), looser tolerance
    params_bf16 = cast_params_for_mxu(params)
    out_bf16 = jax.block_until_ready(
        dqn_forward_batched(boards, params_bf16, out_dtype=jnp.bfloat16))
    assert jnp.allclose(out_bf16.astype(jnp.float32), ref, atol=5e-2, rtol=5e-2)

    print("KERNEL_OK")
</pallas_src>

<mosaic_0001>
module attributes {stable_mosaic.version = 11 : i64} {
  func.func @dqn_kernel(%arg0: i32, %arg1: memref<32x32xi8, #tpu.memory_space<vmem>>, %arg2: memref<32x128xf32, #tpu.memory_space<vmem>>, %arg3: memref<1x128xf32, #tpu.memory_space<vmem>>, %arg4: memref<128x128xf32, #tpu.memory_space<vmem>>, %arg5: memref<1x128xf32, #tpu.memory_space<vmem>>, %arg6: memref<128x128xf32, #tpu.memory_space<vmem>>, %arg7: memref<1x128xf32, #tpu.memory_space<vmem>>, %arg8: memref<32x128xf32, #tpu.memory_space<vmem>>) attributes {dimension_semantics = [#tpu.dimension_semantics<parallel>], iteration_bounds = array<i64: 1>, scalar_prefetch = 0 : i64, scratch_operands = 0 : i64, tpu.core_type = #tpu.core_type<tc>, window_params = [{transform_indices = @transform_0, window_bounds = array<i64: 32, 32>}, {pipeline_mode = #tpu.pipeline_mode<synchronous>, transform_indices = @transform_1, window_bounds = array<i64: 32, 128>}, {pipeline_mode = #tpu.pipeline_mode<synchronous>, transform_indices = @transform_2, window_bounds = array<i64: 1, 128>}, {pipeline_mode = #tpu.pipeline_mode<synchronous>, transform_indices = @transform_3, window_bounds = array<i64: 128, 128>}, {pipeline_mode = #tpu.pipeline_mode<synchronous>, transform_indices = @transform_4, window_bounds = array<i64: 1, 128>}, {pipeline_mode = #tpu.pipeline_mode<synchronous>, transform_indices = @transform_5, window_bounds = array<i64: 128, 128>}, {pipeline_mode = #tpu.pipeline_mode<synchronous>, transform_indices = @transform_6, window_bounds = array<i64: 1, 128>}, {transform_indices = @transform_7, window_bounds = array<i64: 32, 128>}]} {
    %c0 = arith.constant 0 : index
    %c0_0 = arith.constant 0 : index
    %0 = vector.load %arg2[%c0, %c0_0] : memref<32x128xf32, #tpu.memory_space<vmem>>, vector<32x128xf32>
    %c0_1 = arith.constant 0 : index
    %c0_2 = arith.constant 0 : index
    %1 = vector.load %arg4[%c0_1, %c0_2] : memref<128x128xf32, #tpu.memory_space<vmem>>, vector<128x128xf32>
    %c0_3 = arith.constant 0 : index
    %c0_4 = arith.constant 0 : index
    %2 = vector.load %arg6[%c0_3, %c0_4] : memref<128x128xf32, #tpu.memory_space<vmem>>, vector<128x128xf32>
    %c0_5 = arith.constant 0 : index
    %c0_6 = arith.constant 0 : index
    %3 = vector.load %arg1[%c0_5, %c0_6] : memref<32x32xi8, #tpu.memory_space<vmem>>, vector<32x32xi8>
    %4 = arith.sitofp %3 : vector<32x32xi8> to vector<32x32xf32>
    %cst = arith.constant dense<0.000000e+00> : vector<32x128xf32>
    %5 = tpu.matmul %4, %0, %cst {dimension_numbers = #tpu.dot_dimension_numbers<[1], [0], [0], [1], [0, 0, 1, 1], [], []>} : vector<32x32xf32>, vector<32x128xf32>, vector<32x128xf32> -> vector<32x128xf32>
    %c0_7 = arith.constant 0 : index
    %c0_8 = arith.constant 0 : index
    %6 = vector.load %arg3[%c0_7, %c0_8] : memref<1x128xf32, #tpu.memory_space<vmem>>, vector<1x128xf32>
    %7 = vector.broadcast %6 : vector<1x128xf32> to vector<32x128xf32>
    %8 = arith.addf %5, %7 : vector<32x128xf32>
    %cst_9 = arith.constant 0.000000e+00 : f32
    %9 = vector.broadcast %cst_9 : f32 to vector<32x128xf32>
    %10 = arith.maximumf %8, %9 : vector<32x128xf32>
    %cst_10 = arith.constant dense<0.000000e+00> : vector<32x128xf32>
    %11 = tpu.matmul %10, %1, %cst_10 {dimension_numbers = #tpu.dot_dimension_numbers<[1], [0], [0], [1], [0, 0, 1, 1], [], []>} : vector<32x128xf32>, vector<128x128xf32>, vector<32x128xf32> -> vector<32x128xf32>
    %c0_11 = arith.constant 0 : index
    %c0_12 = arith.constant 0 : index
    %12 = vector.load %arg5[%c0_11, %c0_12] : memref<1x128xf32, #tpu.memory_space<vmem>>, vector<1x128xf32>
    %13 = vector.broadcast %12 : vector<1x128xf32> to vector<32x128xf32>
    %14 = arith.addf %11, %13 : vector<32x128xf32>
    %cst_13 = arith.constant 0.000000e+00 : f32
    %15 = vector.broadcast %cst_13 : f32 to vector<32x128xf32>
    %16 = arith.maximumf %14, %15 : vector<32x128xf32>
    %cst_14 = arith.constant dense<0.000000e+00> : vector<32x128xf32>
    %17 = tpu.matmul %16, %2, %cst_14 {dimension_numbers = #tpu.dot_dimension_numbers<[1], [0], [0], [1], [0, 0, 1, 1], [], []>} : vector<32x128xf32>, vector<128x128xf32>, vector<32x128xf32> -> vector<32x128xf32>
    %c0_15 = arith.constant 0 : index
    %c0_16 = arith.constant 0 : index
    %18 = vector.load %arg7[%c0_15, %c0_16] : memref<1x128xf32, #tpu.memory_space<vmem>>, vector<1x128xf32>
    %19 = vector.broadcast %18 : vector<1x128xf32> to vector<32x128xf32>
    %20 = arith.addf %17, %19 : vector<32x128xf32>
    %c0_17 = arith.constant 0 : index
    %c0_18 = arith.constant 0 : index
    %21 = vector.load %arg8[%c0_17, %c0_18] : memref<32x128xf32, #tpu.memory_space<vmem>>, vector<32x128xf32>
    tpu.vector_store %arg8[%c0_17, %c0_18], %20 {strides = array<i32>} : memref<32x128xf32, #tpu.memory_space<vmem>>, vector<32x128xf32>,
    return
  }
  func.func @transform_0(%arg0: i32) -> (i32, i32) {
    %c0_i32 = arith.constant 0 : i32
    %c0_i32_0 = arith.constant 0 : i32
    return %arg0, %c0_i32 : i32, i32
  }
  func.func @transform_1(%arg0: i32) -> (i32, i32) {
    %c0_i32 = arith.constant 0 : i32
    %c0_i32_0 = arith.constant 0 : i32
    %c0_i32_1 = arith.constant 0 : i32
    return %c0_i32, %c0_i32_0 : i32, i32
  }
  func.func @transform_2(%arg0: i32) -> (i32, i32) {
    %c0_i32 = arith.constant 0 : i32
    %c0_i32_0 = arith.constant 0 : i32
    %c0_i32_1 = arith.constant 0 : i32
    return %c0_i32, %c0_i32_0 : i32, i32
  }
  func.func @transform_3(%arg0: i32) -> (i32, i32) {
    %c0_i32 = arith.constant 0 : i32
    %c0_i32_0 = arith.constant 0 : i32
    %c0_i32_1 = arith.constant 0 : i32
    return %c0_i32, %c0_i32_0 : i32, i32
  }
  func.func @transform_4(%arg0: i32) -> (i32, i32) {
    %c0_i32 = arith.constant 0 : i32
    %c0_i32_0 = arith.constant 0 : i32
    %c0_i32_1 = arith.constant 0 : i32
    return %c0_i32, %c0_i32_0 : i32, i32
  }
  func.func @transform_5(%arg0: i32) -> (i32, i32) {
    %c0_i32 = arith.constant 0 : i32
    %c0_i32_0 = arith.constant 0 : i32
    %c0_i32_1 = arith.constant 0 : i32
    return %c0_i32, %c0_i32_0 : i32, i32
  }
  func.func @transform_6(%arg0: i32) -> (i32, i32) {
    %c0_i32 = arith.constant 0 : i32
    %c0_i32_0 = arith.constant 0 : i32
    %c0_i32_1 = arith.constant 0 : i32
    return %c0_i32, %c0_i32_0 : i32, i32
  }
  func.func @transform_7(%arg0: i32) -> (i32, i32) {
    %c0_i32 = arith.constant 0 : i32
    %c0_i32_0 = arith.constant 0 : i32
    return %arg0, %c0_i32 : i32, i32
  }
}

</mosaic_0001>

<llo_original>
// kernel: tpu_custom_call.1
$region0: #{tpu_custom_call.1}
  #allocation0 [shape = 'u32[]', space=smem, size = 0x4, offset = 0x4, fixed_abs, tag = 'smem constant byte address 0x4 - core index']
  #allocation1 [shape = 'u32[72,128]{1,0:T(1,128)}', space=vmem, size = 0x9000, scoped, tag = 'internal scratch']
  %s0 = inlined_call_operand.hbm [shape: s8[32,32], index: 0, kind: input, shape index: {}]
  %s1 = inlined_call_operand.hbm [shape: f32[32,128], index: 1, kind: input, shape index: {}]
  %s2 = inlined_call_operand.vmem [shape: f32[1,128], index: 2, kind: input, shape index: {}]
  %s3 = inlined_call_operand.hbm [shape: f32[128,128], index: 3, kind: input, shape index: {}]
  %s4 = inlined_call_operand.vmem [shape: f32[1,128], index: 4, kind: input, shape index: {}]
  %s5 = inlined_call_operand.hbm [shape: f32[128,128], index: 5, kind: input, shape index: {}]
  %s6 = inlined_call_operand.vmem [shape: f32[1,128], index: 6, kind: input, shape index: {}]
  %s7 = inlined_call_operand.hbm [shape: f32[32,128], index: 7, kind: output, shape index: {}]
  %s8 = sld [smem:[#allocation0]]
  $region54: #{tpu_custom_call.1} parent=0
    _
  %s10 = ssub.s32 1, %s8
  %s11 = scalar_select 0, %s10, %s8
  $region1: #{tpu_custom_call.1} parent=0
    #allocation2 [shape = 'u8[4096]{0}', space=vmem, size = 0x1000, scoped, tag = 'input window, operand 0, single buffered']
    #allocation3 [shape = 's32[1]{0}', space=sflag, size = 0x4, scoped, tag = 'scoped memory for tpu_custom_call.1']
    #allocation4 [shape = 's32[1]{0}', space=sflag, size = 0x4, scoped, tag = 'scoped memory for tpu_custom_call.1']
    #allocation5 [shape = 'u8[16384]{0}', space=vmem, size = 0x4000, scoped, tag = 'input window, operand 1, single buffered']
    #allocation6 [shape = 's32[1]{0}', space=sflag, size = 0x4, scoped, tag = 'scoped memory for tpu_custom_call.1']
    #allocation7 [shape = 'u8[65536]{0}', space=vmem, size = 0x10000, scoped, tag = 'input window, operand 3, single buffered']
    #allocation8 [shape = 'u8[65536]{0}', space=vmem, size = 0x10000, scoped, tag = 'input window, operand 5, single buffered']
    #allocation9 [shape = 's32[1]{0}', space=sflag, size = 0x4, scoped, tag = 'scoped memory for tpu_custom_call.1']
    #allocation10 [shape = 'u8[16384]{0}', space=vmem, size = 0x4000, scoped, tag = 'output window, operand 0, single buffered']
    %12 = vsyncpa [#allocation3], 0
    %13 = vsyncpa [#allocation6], 0
    %14 = vsyncpa [#allocation9], 0
    %15 = vsyncpa [#allocation4], 0
    // Predicated region
    $region2: #{tpu_custom_call.1} parent=1 // pred_check
      _
    $region3: #{tpu_custom_call.1} parent=1 // pred_check_branch
      %17 = sbr.rel (0) target = $region5
    $region4: #{tpu_custom_call.1} parent=1 // pred_region
      %19 = vsyncadd [#allocation3], 0
      %s21 = sshll.u32 %s0, 4
      %s22 = int_to_ptr.hbm [resolvable:$true] %s21
      %s23 = sshll.u32 [#allocation2], 4
      %s24 = int_to_ptr.vmem [resolvable:$true] %s23
      %26 = dma.hbm_to_vmem [thread:$0]  %s22, 128, %s24, [#allocation3]
    $region5: #{tpu_custom_call.1} parent=1 // pred_fallthru
      _
    // Predicated region
    $region6: #{tpu_custom_call.1} parent=1 // pred_check
      _
    $region7: #{tpu_custom_call.1} parent=1 // pred_check_branch
      %28 = sbr.rel (0) target = $region9
    $region8: #{tpu_custom_call.1} parent=1 // pred_region
      %30 = vsyncadd [#allocation6], 0
      %s31 = sshll.u32 %s1, 4
      %s32 = int_to_ptr.hbm [resolvable:$true] %s31
      %s33 = sshll.u32 [#allocation5], 4
      %s34 = int_to_ptr.vmem [resolvable:$true] %s33
      %39 = dma.hbm_to_vmem [thread:$0]  %s32, 512, %s34, [#allocation6], 128, 128, 8
    $region9: #{tpu_custom_call.1} parent=1 // pred_fallthru
      _
    // Predicated region
    $region10: #{tpu_custom_call.1} parent=1 // pred_check
      _
    $region11: #{tpu_custom_call.1} parent=1 // pred_check_branch
      %41 = sbr.rel (0) target = $region13
    $region12: #{tpu_custom_call.1} parent=1 // pred_region
      _
    $region13: #{tpu_custom_call.1} parent=1 // pred_fallthru
      _
    // Predicated region
    $region14: #{tpu_custom_call.1} parent=1 // pred_check
      _
    $region15: #{tpu_custom_call.1} parent=1 // pred_check_branch
      %43 = sbr.rel (0) target = $region17
    $region16: #{tpu_custom_call.1} parent=1 // pred_region
      %45 = vsyncadd [#allocation6], 0
      %s46 = sshll.u32 %s3, 4
      %s47 = int_to_ptr.hbm [resolvable:$true] %s46
      %s48 = sshll.u32 [#allocation7], 4
      %s49 = int_to_ptr.vmem [resolvable:$true] %s48
      %54 = dma.hbm_to_vmem [thread:$0]  %s47, 2048, %s49, [#allocation6], 128, 128, 8
    $region17: #{tpu_custom_call.1} parent=1 // pred_fallthru
      _
    // Predicated region
    $region18: #{tpu_custom_call.1} parent=1 // pred_check
      _
    $region19: #{tpu_custom_call.1} parent=1 // pred_check_branch
      %56 = sbr.rel (0) target = $region21
    $region20: #{tpu_custom_call.1} parent=1 // pred_region
      _
    $region21: #{tpu_custom_call.1} parent=1 // pred_fallthru
      _
    // Predicated region
    $region22: #{tpu_custom_call.1} parent=1 // pred_check
      _
    $region23: #{tpu_custom_call.1} parent=1 // pred_check_branch
      %58 = sbr.rel (0) target = $region25
    $region24: #{tpu_custom_call.1} parent=1 // pred_region
      %60 = vsyncadd [#allocation9], 0
      %s61 = sshll.u32 %s5, 4
      %s62 = int_to_ptr.hbm [resolvable:$true] %s61
      %s63 = sshll.u32 [#allocation8], 4
      %s64 = int_to_ptr.vmem [resolvable:$true] %s63
      %69 = dma.hbm_to_vmem [thread:$0]  %s62, 2048, %s64, [#allocation9], 128, 128, 8
    $region25: #{tpu_custom_call.1} parent=1 // pred_fallthru
      _
    // Predicated region
    $region26: #{tpu_custom_call.1} parent=1 // pred_check
      _
    $region27: #{tpu_custom_call.1} parent=1 // pred_check_branch
      %71 = sbr.rel (0) target = $region29
    $region28: #{tpu_custom_call.1} parent=1 // pred_region
      _
    $region29: #{tpu_custom_call.1} parent=1 // pred_fallthru
      _
    // Predicated region
    $region30: #{tpu_custom_call.1} parent=1 // pred_check
      _
    $region31: #{tpu_custom_call.1} parent=1 // pred_check_branch
      %73 = sbr.rel (0) target = $region33
    $region32: #{tpu_custom_call.1} parent=1 // pred_region
      %75 = dma.done [#allocation3], 128
    $region33: #{tpu_custom_call.1} parent=1 // pred_fallthru
      _
    // Predicated region
    $region34: #{tpu_custom_call.1} parent=1 // pred_check
      _
    $region35: #{tpu_custom_call.1} parent=1 // pred_check_branch
      %77 = sbr.rel (0) target = $region37
    $region36: #{tpu_custom_call.1} parent=1 // pred_region
      %79 = dma.done [#allocation6], 512
    $region37: #{tpu_custom_call.1} parent=1 // pred_fallthru
      _
    // Predicated region
    $region38: #{tpu_custom_call.1} parent=1 // pred_check
      _
    $region39: #{tpu_custom_call.1} parent=1 // pred_check_branch
      %81 = sbr.rel (0) target = $region41
    $region40: #{tpu_custom_call.1} parent=1 // pred_region
      %83 = dma.done [#allocation6], 2048
    $region41: #{tpu_custom_call.1} parent=1 // pred_fallthru
      _
    // Predicated region
    $region42: #{tpu_custom_call.1} parent=1 // pred_check
      _
    $region43: #{tpu_custom_call.1} parent=1 // pred_check_branch
      %85 = sbr.rel (0) target = $region45
    $region44: #{tpu_custom_call.1} parent=1 // pred_region
      %87 = dma.done [#allocation9], 2048
    $region45: #{tpu_custom_call.1} parent=1 // pred_fallthru
      _
    %v88 = vld [vmem:[#allocation5] sm:$0xff]
    %v89 = vld [vmem:[#allocation5 + $0x8] sm:$0xff]
    %v90 = vld [vmem:[#allocation5 + $0x10] sm:$0xff]
    %v91 = vld [vmem:[#allocation5 + $0x18] sm:$0xff]
    %v92 = vld [vmem:[#allocation7] sm:$0xff]
    %v93 = vld [vmem:[#allocation7 + $0x8] sm:$0xff]
    %v94 = vld [vmem:[#allocation7 + $0x10] sm:$0xff]
    %v95 = vld [vmem:[#allocation7 + $0x18] sm:$0xff]
    %v96 = vld [vmem:[#allocation7 + $0x20] sm:$0xff]
    %v97 = vld [vmem:[#allocation7 + $0x28] sm:$0xff]
    %v98 = vld [vmem:[#allocation7 + $0x30] sm:$0xff]
    %v99 = vld [vmem:[#allocation7 + $0x38] sm:$0xff]
    %v100 = vld [vmem:[#allocation7 + $0x40] sm:$0xff]
    %v101 = vld [vmem:[#allocation7 + $0x48] sm:$0xff]
    %v102 = vld [vmem:[#allocation7 + $0x50] sm:$0xff]
    %v103 = vld [vmem:[#allocation7 + $0x58] sm:$0xff]
    %v104 = vld [vmem:[#allocation7 + $0x60] sm:$0xff]
    %v105 = vld [vmem:[#allocation7 + $0x68] sm:$0xff]
    %v106 = vld [vmem:[#allocation7 + $0x70] sm:$0xff]
    %v107 = vld [vmem:[#allocation7 + $0x78] sm:$0xff]
    %v108 = vld [vmem:[#allocation8] sm:$0xff]
    %v109 = vld [vmem:[#allocation8 + $0x8] sm:$0xff]
    %v110 = vld [vmem:[#allocation8 + $0x10] sm:$0xff]
    %v111 = vld [vmem:[#allocation8 + $0x18] sm:$0xff]
    %v112 = vld [vmem:[#allocation8 + $0x20] sm:$0xff]
    %v113 = vld [vmem:[#allocation8 + $0x28] sm:$0xff]
    %v114 = vld [vmem:[#allocation8 + $0x30] sm:$0xff]
    %v115 = vld [vmem:[#allocation8 + $0x38] sm:$0xff]
    %v116 = vld [vmem:[#allocation8 + $0x40] sm:$0xff]
    %v117 = vld [vmem:[#allocation8 + $0x48] sm:$0xff]
    %v118 = vld [vmem:[#allocation8 + $0x50] sm:$0xff]
    %v119 = vld [vmem:[#allocation8 + $0x58] sm:$0xff]
    %v120 = vld [vmem:[#allocation8 + $0x60] sm:$0xff]
    %v121 = vld [vmem:[#allocation8 + $0x68] sm:$0xff]
    %v122 = vld [vmem:[#allocation8 + $0x70] sm:$0xff]
    %v123 = vld [vmem:[#allocation8 + $0x78] sm:$0xff]
    %v124 = vld [vmem:[#allocation2] sm:$0xff]
    %v125 = vunpack.c.0.s8 %v124
    %v126 = vunpack.c.1.s8 %v124
    %v127 = vunpack.c.2.s8 %v124
    %v128 = vunpack.c.3.s8 %v124
    %v129 = vcvt.s32.f32 %v125
    %v130 = vcvt.s32.f32 %v126
    %v131 = vcvt.s32.f32 %v127
    %v132 = vcvt.s32.f32 %v128
    %v133 = vld [vmem:[%s2] sm:$0x1]
    %v135 = vperm.slane %v133, 0
    %vm137 = vcmask 261120
    %v139 = vsel %vm137, %v129, 0
    %v142 = vsel %vm137, %v130, 0
    %v145 = vsel %vm137, %v131, 0
    %v148 = vsel %vm137, %v132, 0
    %150 = vmatpush.msra.mxu0 0.0
    %151 = vmatpush.msra.mxu0 0.0
    %152 = vmatpush.msra.mxu0 0.0
    %153 = vmatpush.msra.mxu0 0.0
    %154 = vmatpush.msra.mxu0 0.0
    %155 = vmatpush.msra.mxu0 0.0
    %156 = vmatpush.msra.mxu0 0.0
    %157 = vmatpush.msra.mxu0 0.0
    %158 = vmatpush.msra.mxu0 0.0
    %159 = vmatpush.msra.mxu0 0.0
    %160 = vmatpush.msra.mxu0 0.0
    %161 = vmatpush.msra.mxu0 0.0
    %162 = vmatpush.msra.mxu0 %v91
    %163 = vmatpush.msra.mxu0 %v90
    %164 = vmatpush.msra.mxu0 %v89
    %165 = vmatpush.msra.mxu0 %v88
    %166 = vmatmul.f32.gmra.mxu0 %v139
    %v167 = vpop.f32.mrf.mxu0
    %v168 = vadd.f32 %v135, %v167
    %169 = vmatmul.f32.gmra.mxu0 %v142
    %v170 = vpop.f32.mrf.mxu0
    %v171 = vadd.f32 %v135, %v170
    %172 = vmatmul.f32.gmra.mxu0 %v145
    %v173 = vpop.f32.mrf.mxu0
    %v174 = vadd.f32 %v135, %v173
    %175 = vmatmul.f32.gmra.mxu0 %v148
    %v176 = vpop.f32.mrf.mxu0
    %v177 = vadd.f32 %v135, %v176
    %178 = vdwg.mxu0
    %v179 = vmax.f32 %v168, 0.0
    %v180 = vmax.f32 %v171, 0.0
    %v181 = vmax.f32 %v174, 0.0
    %v182 = vmax.f32 %v177, 0.0
    %v183 = vld [vmem:[%s4] sm:$0x1]
    %v185 = vperm.slane %v183, 0
    %187 = vmatpush.msra.mxu0 %v107
    %188 = vmatpush.msra.mxu0 %v106
    %189 = vmatpush.msra.mxu0 %v105
    %190 = vmatpush.msra.mxu0 %v104
    %191 = vmatpush.msra.mxu0 %v103
    %192 = vmatpush.msra.mxu0 %v102
    %193 = vmatpush.msra.mxu0 %v101
    %194 = vmatpush.msra.mxu0 %v100
    %195 = vmatpush.msra.mxu0 %v99
    %196 = vmatpush.msra.mxu0 %v98
    %197 = vmatpush.msra.mxu0 %v97
    %198 = vmatpush.msra.mxu0 %v96
    %199 = vmatpush.msra.mxu0 %v95
    %200 = vmatpush.msra.mxu0 %v94
    %201 = vmatpush.msra.mxu0 %v93
    %202 = vmatpush.msra.mxu0 %v92
    %203 = vmatmul.f32.gmra.mxu0 %v179
    %v204 = vpop.f32.mrf.mxu0
    %v205 = vadd.f32 %v185, %v204
    %206 = vmatmul.f32.gmra.mxu0 %v180
    %v207 = vpop.f32.mrf.mxu0
    %v208 = vadd.f32 %v185, %v207
    %209 = vmatmul.f32.gmra.mxu0 %v181
    %v210 = vpop.f32.mrf.mxu0
    %v211 = vadd.f32 %v185, %v210
    %212 = vmatmul.f32.gmra.mxu0 %v182
    %v213 = vpop.f32.mrf.mxu0
    %v214 = vadd.f32 %v185, %v213
    %215 = vdwg.mxu0
    %v216 = vmax.f32 %v205, 0.0
    %v217 = vmax.f32 %v208, 0.0
    %v218 = vmax.f32 %v211, 0.0
    %v219 = vmax.f32 %v214, 0.0
    %v220 = vld [vmem:[%s6] sm:$0x1]
    %v222 = vperm.slane %v220, 0
    %224 = vmatpush.msra.mxu0 %v123
    %225 = vmatpush.msra.mxu0 %v122
    %226 = vmatpush.msra.mxu0 %v121
    %227 = vmatpush.msra.mxu0 %v120
    %228 = vmatpush.msra.mxu0 %v119
    %229 = vmatpush.msra.mxu0 %v118
    %230 = vmatpush.msra.mxu0 %v117
    %231 = vmatpush.msra.mxu0 %v116
    %232 = vmatpush.msra.mxu0 %v115
    %233 = vmatpush.msra.mxu0 %v114
    %234 = vmatpush.msra.mxu0 %v113
    %235 = vmatpush.msra.mxu0 %v112
    %236 = vmatpush.msra.mxu0 %v111
    %237 = vmatpush.msra.mxu0 %v110
    %238 = vmatpush.msra.mxu0 %v109
    %239 = vmatpush.msra.mxu0 %v108
    %240 = vmatmul.f32.gmra.mxu0 %v216
    %v241 = vpop.f32.mrf.mxu0
    %v242 = vadd.f32 %v222, %v241
    %243 = vmatmul.f32.gmra.mxu0 %v217
    %v244 = vpop.f32.mrf.mxu0
    %v245 = vadd.f32 %v222, %v244
    %246 = vmatmul.f32.gmra.mxu0 %v218
    %v247 = vpop.f32.mrf.mxu0
    %v248 = vadd.f32 %v222, %v247
    %249 = vmatmul.f32.gmra.mxu0 %v219
    %v250 = vpop.f32.mrf.mxu0
    %v251 = vadd.f32 %v222, %v250
    %252 = vdwg.mxu0
    %253 = vst [vmem:[#allocation10] sm:$0xff] %v242
    %254 = vst [vmem:[#allocation10 + $0x8] sm:$0xff] %v245
    %255 = vst [vmem:[#allocation10 + $0x10] sm:$0xff] %v248
    %256 = vst [vmem:[#allocation10 + $0x18] sm:$0xff] %v251
    // Predicated region
    $region46: #{tpu_custom_call.1} parent=1 // pred_check
      _
    $region47: #{tpu_custom_call.1} parent=1 // pred_check_branch
      %258 = sbr.rel (0) target = $region49
    $region48: #{tpu_custom_call.1} parent=1 // pred_region
      %260 = vsyncadd [#allocation4], 0
      %s261 = sshll.u32 [#allocation10], 4
      %s262 = int_to_ptr.vmem [resolvable:$true] %s261
      %s263 = sshll.u32 %s7, 4
      %s264 = int_to_ptr.hbm [resolvable:$true] %s263
      %269 = dma.vmem_to_hbm [thread:$0]  %s262, 512, %s264, [#allocation4], 128, 128, 8
    $region49: #{tpu_custom_call.1} parent=1 // pred_fallthru
      _
    // Predicated region
    $region50: #{tpu_custom_call.1} parent=1 // pred_check
      _
    $region51: #{tpu_custom_call.1} parent=1 // pred_check_branch
      %271 = sbr.rel (0) target = $region53
    $region52: #{tpu_custom_call.1} parent=1 // pred_region
      %273 = dma.done [#allocation4], 512
    $region53: #{tpu_custom_call.1} parent=1 // pred_fallthru
      _
    %274 = vsyncpa [#allocation3], 1
    %275 = vsyncpa [#allocation6], 1
    %276 = vsyncpa [#allocation9], 1
    %277 = vsyncpa [#allocation4], 1

</llo_original>
